<compile_context>
chip_gen: v7x
topology: tpu7x:2x2x1
jax: 0.10.0
libtpu: 0.0.40
codegen_flags: <defaults>
</compile_context>

<pallas_src>
import functools

import jax
import jax.numpy as jnp
from jax.experimental import pallas as pl
from jax.experimental.pallas import tpu as pltpu


def _masked_log_softmax_slab(res, hidden_size):
    """res: [B, H+O] = [new_hidden || logits].  Returns the same slab with the
    logit columns replaced by their log-softmax.  Reductions are masked to the
    logical logit columns only, so fused/padded layouts stay correct."""
    col = jax.lax.broadcasted_iota(jnp.int32, res.shape, 1)
    is_logit = col >= hidden_size
    m = jnp.max(jnp.where(is_logit, res, -jnp.inf), axis=1, keepdims=True)
    e = jnp.where(is_logit, jnp.exp(res - m), 0.0)
    lse = jnp.log(jnp.sum(e, axis=1, keepdims=True))
    return jnp.where(is_logit, res - m - lse, res)


def rnn2_step_kernel(comb_ref, w_ref, b_ref, res_ref, *, hidden_size):
    # One fused MXU matmul: [B, I+H] @ [I+H, H+O] + [1, H+O]
    res = jnp.dot(comb_ref[...], w_ref[...],
                  preferred_element_type=jnp.float32) + b_ref[...]
    res_ref[...] = _masked_log_softmax_slab(res, hidden_size).astype(res_ref.dtype)


def rnn2_seq_kernel(x_ref, h0_ref, wx_ref, wh_ref, b_ref, out_ref,
                    h_scratch, *, hidden_size):
    t = pl.program_id(0)

    @pl.when(t == 0)
    def _():
        h_scratch[...] = h0_ref[...]

    x = x_ref[0]            # [B, I]
    h = h_scratch[...]      # [B, H]
    # Split-K matmul keeps x and h in their native layouts (no in-kernel concat).
    res = (jnp.dot(x, wx_ref[...], preferred_element_type=jnp.float32)
           + jnp.dot(h, wh_ref[...], preferred_element_type=jnp.float32)
           + b_ref[...])    # [B, H+O]

    h_scratch[...] = res[:, :hidden_size]                 # carry hidden in VMEM
    out_ref[0] = _masked_log_softmax_slab(res, hidden_size).astype(out_ref.dtype)


def prepare_params(w_i2h, b_i2h, w_i2o, b_i2o):
    """Fuse + transpose the PyTorch-layout parameters ONCE (hoisted out of the
    per-step path).  Returns (w_fused [I+H, H+O], b_fused [1, H+O]); columns are
    [hidden | output]."""
    w_fused = jnp.concatenate(
        [jnp.asarray(w_i2h, jnp.float32).T, jnp.asarray(w_i2o, jnp.float32).T],
        axis=1)
    b_fused = jnp.concatenate(
        [jnp.asarray(b_i2h, jnp.float32), jnp.asarray(b_i2o, jnp.float32)])[None, :]
    return w_fused, b_fused


def rnn2_step(x, h, w_fused, b_fused):
    """Single RNN_2.forward step.  Returns (log_softmax_output [B,O], hidden [B,H])."""
    B, _ = x.shape
    H = h.shape[1]
    IH, HO = w_fused.shape

    # Wrapper-side concat: single [B, I+H] operand -> one input DMA, no
    # cross-lane concat inside the kernel.
    combined = jnp.concatenate([x.astype(jnp.float32), h.astype(jnp.float32)],
                               axis=1)

    full = lambda shape: pl.BlockSpec(shape, lambda: (0,) * len(shape))
    res = pl.pallas_call(
        functools.partial(rnn2_step_kernel, hidden_size=H),
        out_shape=jax.ShapeDtypeStruct((B, HO), jnp.float32),
        in_specs=[full((B, IH)), full((IH, HO)), full((1, HO))],
        out_specs=full((B, HO)),
    )(combined, w_fused, b_fused)

    return res[:, H:], res[:, :H]


def rnn2_sequence(x_seq, h0, w_fused, b_fused):
    """Run the RNN_2 cell over a whole sequence inside ONE kernel launch.
    x_seq: [T, B, I].  Returns (log_probs [T, B, O], final hidden [B, H])."""
    T, B, I = x_seq.shape
    H = h0.shape[1]
    HO = w_fused.shape[1]

    wx = w_fused[:I]      # [I, H+O]
    wh = w_fused[I:]      # [H, H+O]

    out_seq = pl.pallas_call(
        functools.partial(rnn2_seq_kernel, hidden_size=H),
        out_shape=jax.ShapeDtypeStruct((T, B, HO), jnp.float32),
        grid=(T,),
        in_specs=[
            pl.BlockSpec((1, B, I), lambda t: (t, 0, 0)),   # per-step input tile
            pl.BlockSpec((B, H), lambda t: (0, 0)),         # h0 (resident)
            pl.BlockSpec((I, HO), lambda t: (0, 0)),        # weights resident in VMEM
            pl.BlockSpec((H, HO), lambda t: (0, 0)),
            pl.BlockSpec((1, HO), lambda t: (0, 0)),
        ],
        out_specs=pl.BlockSpec((1, B, HO), lambda t: (t, 0, 0)),
        scratch_shapes=[pltpu.VMEM((B, H), jnp.float32)],    # recurrent hidden state
        compiler_params=pltpu.CompilerParams(
            dimension_semantics=("arbitrary",)),             # sequential recurrence
    )(x_seq.astype(jnp.float32), h0.astype(jnp.float32), wx, wh, b_fused)

    return out_seq[:, :, H:], out_seq[-1, :, :H]


def reference_step(x, h, w_i2h, b_i2h, w_i2o, b_i2o):
    combined = jnp.concatenate([x, h], axis=1)
    hidden = combined @ w_i2h.T + b_i2h
    logits = combined @ w_i2o.T + b_i2o
    return jax.nn.log_softmax(logits, axis=1), hidden


if __name__ == "__main__":
    batch = 8            # full sublane group (perf feedback: B multiple of 8)
    input_size = 16
    hidden_size = 32
    output_size = 8
    seq_len = 8

    key = jax.random.PRNGKey(0)
    k1, k2, k3, k4, k5 = jax.random.split(key, 5)

    fan_in = input_size + hidden_size
    bound = 1.0 / (fan_in ** 0.5)
    w_i2h = jax.random.uniform(k1, (hidden_size, fan_in), jnp.float32, -bound, bound)
    b_i2h = jax.random.uniform(k2, (hidden_size,), jnp.float32, -bound, bound)
    w_i2o = jax.random.uniform(k3, (output_size, fan_in), jnp.float32, -bound, bound)
    b_i2o = jax.random.uniform(k4, (output_size,), jnp.float32, -bound, bound)

    x_seq = jax.random.normal(k5, (seq_len, batch, input_size), jnp.float32)
    h0 = jnp.zeros((batch, hidden_size), jnp.float32)   # init_hidden() semantics

    # Hoisted: computed once per parameter set, NOT per step.
    w_fused, b_fused = prepare_params(w_i2h, b_i2h, w_i2o, b_i2o)

    # --- single step (matches RNN_2.forward) ---
    out, h_new = rnn2_step(x_seq[0], h0, w_fused, b_fused)
    out, h_new = jax.block_until_ready(out), jax.block_until_ready(h_new)
    out_ref, h_ref = reference_step(x_seq[0], h0, w_i2h, b_i2h, w_i2o, b_i2o)
    assert out.shape == (batch, output_size)
    assert h_new.shape == (batch, hidden_size)
    assert jnp.allclose(out, out_ref, atol=1e-5, rtol=1e-5)
    assert jnp.allclose(h_new, h_ref, atol=1e-5, rtol=1e-5)

    # --- whole sequence in one kernel launch (weights/hidden resident) ---
    outs, h_last = rnn2_sequence(x_seq, h0, w_fused, b_fused)
    outs, h_last = jax.block_until_ready(outs), jax.block_until_ready(h_last)

    def scan_ref(h, x):
        o, h_next = reference_step(x, h, w_i2h, b_i2h, w_i2o, b_i2o)
        return h_next, o

    h_last_ref, outs_ref = jax.lax.scan(scan_ref, h0, x_seq)
    assert outs.shape == (seq_len, batch, output_size)
    assert jnp.allclose(outs, outs_ref, atol=1e-4, rtol=1e-4)
    assert jnp.allclose(h_last, h_last_ref, atol=1e-4, rtol=1e-4)

    print("KERNEL_OK")
</pallas_src>

<mosaic_0001>
module attributes {stable_mosaic.version = 11 : i64} {
  func.func @rnn2_step_kernel(%arg0: memref<8x48xf32, #tpu.memory_space<vmem>>, %arg1: memref<48x40xf32, #tpu.memory_space<vmem>>, %arg2: memref<1x40xf32, #tpu.memory_space<vmem>>, %arg3: memref<8x40xf32, #tpu.memory_space<vmem>>) attributes {dimension_semantics = [], scalar_prefetch = 0 : i64, scratch_operands = 0 : i64, tpu.core_type = #tpu.core_type<tc>} {
    %c0 = arith.constant 0 : index
    %c0_0 = arith.constant 0 : index
    %0 = vector.load %arg0[%c0, %c0_0] : memref<8x48xf32, #tpu.memory_space<vmem>>, vector<8x48xf32>
    %c0_1 = arith.constant 0 : index
    %c0_2 = arith.constant 0 : index
    %1 = vector.load %arg1[%c0_1, %c0_2] : memref<48x40xf32, #tpu.memory_space<vmem>>, vector<48x40xf32>
    %cst = arith.constant dense<0.000000e+00> : vector<8x40xf32>
    %2 = tpu.matmul %0, %1, %cst {dimension_numbers = #tpu.dot_dimension_numbers<[1], [0], [0], [1], [0, 0, 1, 1], [], []>} : vector<8x48xf32>, vector<48x40xf32>, vector<8x40xf32> -> vector<8x40xf32>
    %c0_3 = arith.constant 0 : index
    %c0_4 = arith.constant 0 : index
    %3 = vector.load %arg2[%c0_3, %c0_4] : memref<1x40xf32, #tpu.memory_space<vmem>>, vector<1x40xf32>
    %4 = vector.broadcast %3 : vector<1x40xf32> to vector<8x40xf32>
    %5 = arith.addf %2, %4 : vector<8x40xf32>
    %6 = tpu.iota {dimensions = array<i32: 1>} : vector<8x40xi32>
    %c32_i32 = arith.constant 32 : i32
    %7 = vector.broadcast %c32_i32 : i32 to vector<8x40xi32>
    %8 = arith.cmpi sge, %6, %7 : vector<8x40xi32>
    %cst_5 = arith.constant 0xFF800000 : f32
    %9 = vector.broadcast %cst_5 : f32 to vector<8x40xf32>
    %10 = arith.select %8, %5, %9 : vector<8x40xi1>, vector<8x40xf32>
    %cst_6 = arith.constant dense<0xFF800000> : vector<8xf32>
    %11 = vector.multi_reduction <maximumf>, %10, %cst_6 [1] : vector<8x40xf32> to vector<8xf32>
    %12 = vector.shape_cast %11 : vector<8xf32> to vector<8x1xf32>
    %13 = vector.broadcast %12 : vector<8x1xf32> to vector<8x40xf32>
    %14 = arith.subf %5, %13 : vector<8x40xf32>
    %15 = math.exp %14 : vector<8x40xf32>
    %cst_7 = arith.constant 0.000000e+00 : f32
    %16 = vector.broadcast %cst_7 : f32 to vector<8x40xf32>
    %17 = arith.select %8, %15, %16 : vector<8x40xi1>, vector<8x40xf32>
    %cst_8 = arith.constant dense<0.000000e+00> : vector<8xf32>
    %18 = vector.multi_reduction <add>, %17, %cst_8 [1] : vector<8x40xf32> to vector<8xf32>
    %19 = vector.shape_cast %18 : vector<8xf32> to vector<8x1xf32>
    %20 = math.log %19 : vector<8x1xf32>
    %21 = vector.broadcast %12 : vector<8x1xf32> to vector<8x40xf32>
    %22 = arith.subf %5, %21 : vector<8x40xf32>
    %23 = vector.broadcast %20 : vector<8x1xf32> to vector<8x40xf32>
    %24 = arith.subf %22, %23 : vector<8x40xf32>
    %25 = arith.select %8, %24, %5 : vector<8x40xi1>, vector<8x40xf32>
    %c0_9 = arith.constant 0 : index
    %c0_10 = arith.constant 0 : index
    %26 = vector.load %arg3[%c0_9, %c0_10] : memref<8x40xf32, #tpu.memory_space<vmem>>, vector<8x40xf32>
    tpu.vector_store %arg3[%c0_9, %c0_10], %25 {strides = array<i32>} : memref<8x40xf32, #tpu.memory_space<vmem>>, vector<8x40xf32>,
    return
  }
}

</mosaic_0001>

<llo_original>
// kernel: tpu_custom_call.1
$region0: #{tpu_custom_call.1}
  #allocation0 [shape = 'u32[]', space=smem, size = 0x4, offset = 0x4, fixed_abs, tag = 'smem constant byte address 0x4 - core index']
  #allocation1 [shape = 'u32[144,128]{1,0:T(1,128)}', space=vmem, size = 0x12000, scoped, tag = 'internal scratch']
  %s0 = inlined_call_operand.vmem [shape: f32[8,48], index: 0, kind: input, shape index: {}]
  %s1 = inlined_call_operand.vmem [shape: f32[48,40], index: 1, kind: input, shape index: {}]
  %s2 = inlined_call_operand.vmem [shape: f32[1,40], index: 2, kind: input, shape index: {}]
  %s3 = inlined_call_operand.hbm [shape: f32[8,40], index: 3, kind: output, shape index: {}]
  %s4 = sld [smem:[#allocation0]]
  $region22: #{tpu_custom_call.1} parent=0
    _
  %s6 = ssub.s32 1, %s4
  %s7 = scalar_select 0, %s6, %s4
  $region1: #{tpu_custom_call.1} parent=0
    #allocation2 [shape = 'u8[4096]{0}', space=vmem, size = 0x1000, scoped, tag = 'output window, operand 0, single buffered']
    #allocation3 [shape = 's32[1]{0}', space=sflag, size = 0x4, scoped, tag = 'scoped memory for tpu_custom_call.1']
    %8 = vsyncpa [#allocation3], 0
    // Predicated region
    $region2: #{tpu_custom_call.1} parent=1 // pred_check
      _
    $region3: #{tpu_custom_call.1} parent=1 // pred_check_branch
      %10 = sbr.rel (0) target = $region5
    $region4: #{tpu_custom_call.1} parent=1 // pred_region
      _
    $region5: #{tpu_custom_call.1} parent=1 // pred_fallthru
      _
    // Predicated region
    $region6: #{tpu_custom_call.1} parent=1 // pred_check
      _
    $region7: #{tpu_custom_call.1} parent=1 // pred_check_branch
      %12 = sbr.rel (0) target = $region9
    $region8: #{tpu_custom_call.1} parent=1 // pred_region
      _
    $region9: #{tpu_custom_call.1} parent=1 // pred_fallthru
      _
    // Predicated region
    $region10: #{tpu_custom_call.1} parent=1 // pred_check
      _
    $region11: #{tpu_custom_call.1} parent=1 // pred_check_branch
      %14 = sbr.rel (0) target = $region13
    $region12: #{tpu_custom_call.1} parent=1 // pred_region
      _
    $region13: #{tpu_custom_call.1} parent=1 // pred_fallthru
      _
    %v15 = vld [vmem:[%s0] sm:$0xff]
    %v16 = vld [vmem:[%s1] sm:$0xff]
    %v17 = vld [vmem:[%s1 + $0x8] sm:$0xff]
    %v18 = vld [vmem:[%s1 + $0x10] sm:$0xff]
    %v19 = vld [vmem:[%s1 + $0x18] sm:$0xff]
    %v20 = vld [vmem:[%s1 + $0x20] sm:$0xff]
    %v21 = vld [vmem:[%s1 + $0x28] sm:$0xff]
    %v22 = vld [vmem:[%s2] sm:$0x1]
    %v24 = vlaneseq
    %v25 = vshrl.u32 %v24, 7
    %v26 = vsub.s32 0, %v25
    %v27 = vrot.slane %v22, %v26
    %vm29 = vcmask 392192
    %v31 = vsel %vm29, %v15, 0
    %33 = vmatprep.subr.mxu0 0.0
    %34 = vmatpush1.msra.mxu0 %v16
    %35 = vmatprep.subr.mxu0 0.0
    %36 = vmatpush1.msra.mxu0 %v17
    %37 = vmatprep.subr.mxu0 0.0
    %38 = vmatpush1.msra.mxu0 %v18
    %39 = vmatprep.subr.mxu0 0.0
    %40 = vmatpush1.msra.mxu0 %v19
    %41 = vmatprep.subr.mxu0 0.0
    %42 = vmatpush1.msra.mxu0 %v20
    %43 = vmatprep.subr.mxu0 0.0
    %44 = vmatpush1.msra.mxu0 %v21
    %45 = vmatprep.subr.mxu0 0.0
    %46 = vmatpush1.msra.mxu0 0.0
    %47 = vmatprep.subr.mxu0 0.0
    %48 = vmatpush1.msra.mxu0 0.0
    %49 = vmatprep.subr.mxu0 0.0
    %50 = vmatpush1.msra.mxu0 0.0
    %51 = vmatprep.subr.mxu0 0.0
    %52 = vmatpush1.msra.mxu0 0.0
    %53 = vmatprep.subr.mxu0 0.0
    %54 = vmatpush1.msra.mxu0 0.0
    %55 = vmatprep.subr.mxu0 0.0
    %56 = vmatpush1.msra.mxu0 0.0
    %57 = vmatprep.subr.mxu0 0.0
    %58 = vmatpush1.msra.mxu0 0.0
    %59 = vmatprep.subr.mxu0 0.0
    %60 = vmatpush1.msra.mxu0 0.0
    %61 = vmatprep.subr.mxu0 0.0
    %62 = vmatpush1.msra.mxu0 0.0
    %63 = vmatprep.subr.mxu0 0.0
    %64 = vmatpush1.msra.mxu0 0.0
    %65 = vmatprep.subr.mxu0 0.0
    %66 = vmatpush1.msra.mxu0 0.0
    %67 = vmatprep.subr.mxu0 0.0
    %68 = vmatpush1.msra.mxu0 0.0
    %69 = vmatprep.subr.mxu0 0.0
    %70 = vmatpush1.msra.mxu0 0.0
    %71 = vmatprep.subr.mxu0 0.0
    %72 = vmatpush1.msra.mxu0 0.0
    %73 = vmatprep.subr.mxu0 0.0
    %74 = vmatpush1.msra.mxu0 0.0
    %75 = vmatprep.subr.mxu0 0.0
    %76 = vmatpush1.msra.mxu0 0.0
    %77 = vmatprep.subr.mxu0 0.0
    %78 = vmatpush1.msra.mxu0 0.0
    %79 = vmatprep.subr.mxu0 0.0
    %80 = vmatpush1.msra.mxu0 0.0
    %81 = vmatprep.subr.mxu0 0.0
    %82 = vmatpush1.msra.mxu0 0.0
    %83 = vmatprep.subr.mxu0 0.0
    %84 = vmatpush1.msra.mxu0 0.0
    %85 = vmatprep.subr.mxu0 0.0
    %86 = vmatpush1.msra.mxu0 0.0
    %87 = vmatprep.subr.mxu0 0.0
    %88 = vmatpush1.msra.mxu0 0.0
    %89 = vmatprep.subr.mxu0 0.0
    %90 = vmatpush1.msra.mxu0 0.0
    %91 = vmatprep.subr.mxu0 0.0
    %92 = vmatpush1.msra.mxu0 0.0
    %93 = vmatprep.subr.mxu0 0.0
    %94 = vmatpush1.msra.mxu0 0.0
    %95 = vmatprep.subr.mxu0 0.0
    %96 = vmatpush1.msra.mxu0 0.0
    %97 = vmatprep.mubr.f32.mxu0 0.0
    %98 = vmatmul.mubr.f32.gmra.mrb[0].mxu0 %v31
    %v99 = vpop.f32.mrb[0].mxu0
    %v100 = vadd.f32 %v27, %v99
    %v101 = vpop.f32.mrb[0].mxu0
    %102 = vdwg.mxu0
    %v103 = vlaneseq
    %v104 = vand.u32 %v103, 127
    %vm105 = vcmp.ge.s32.totalorder %v104, 32
    %v106 = vsel %vm105, %v100, -inf
    %vm107 = vcmask 326656
    %v108 = vsel %vm107, %v106, -inf
    %109 = vmax.xlane.f32.xlu0 %v108
    %v110 = vpop.xlane.xlu0 %109
    %v111 = vsub.f32 %v100, %v110
    %v112 = vmul.f32 %v111, 1.442695
    %v113 = vpow.pop %v112
    %v114 = vsel %vm105, %v113, 0.0
    %v115 = vsel %vm107, %v114, 0.0
    %116 = vadd.xlane.f32.xlu0 %v115
    %v117 = vpop.xlane.xlu0 %116
    %v118 = vlog2.pop %v117
    %v119 = vmul.f32 %v118, 0.6931472
    %v120 = vsub.f32 %v111, %v119
    %v121 = vsel %vm105, %v120, %v100
    %122 = vst.msk [vmem:[#allocation2] sm:$0xff] %vm107, %v121
    // Predicated region
    $region14: #{tpu_custom_call.1} parent=1 // pred_check
      _
    $region15: #{tpu_custom_call.1} parent=1 // pred_check_branch
      %124 = sbr.rel (0) target = $region17
    $region16: #{tpu_custom_call.1} parent=1 // pred_region
      %s126 = ssub.s32 128, 128
      %127 = vsyncadd [#allocation3], %s126
      %s129 = sshll.u32 [#allocation2], 4
      %s130 = int_to_ptr.vmem [resolvable:$true] %s129
      %132 = dma.vmem_to_hbm [thread:$0]  %s130, 128, %s3, [#allocation3]
    $region17: #{tpu_custom_call.1} parent=1 // pred_fallthru
      _
    // Predicated region
    $region18: #{tpu_custom_call.1} parent=1 // pred_check
      _
    $region19: #{tpu_custom_call.1} parent=1 // pred_check_branch
      %134 = sbr.rel (0) target = $region21
    $region20: #{tpu_custom_call.1} parent=1 // pred_region
      %135 = dma.done [#allocation3], 128
    $region21: #{tpu_custom_call.1} parent=1 // pred_fallthru
      _
    %136 = vsyncpa [#allocation3], 1

</llo_original>
